<compile_context>
chip_gen: v7x
topology: tpu7x:2x2x1
jax: 0.10.0
libtpu: 0.0.40
codegen_flags: <defaults>
</compile_context>

<pallas_src>
import functools

import jax
import jax.numpy as jnp
from jax.experimental import pallas as pl
from jax.experimental.pallas import tpu as pltpu


def _fused_conv_bn_relu_kernel(w_ref, b_ref, x_ref, o_ref):
    # w_ref : SMEM (Cout*2*Cin,) folded weights, [co*2*Cin + tap*Cin + ci]
    # b_ref : SMEM (Cout,)       folded bias
    # x_ref : VMEM (2*Cin, NB, S) channel-major input; rows [:Cin] = even tap,
    #                             rows [Cin:] = odd tap; S = H_out*W (lane-dense)
    # o_ref : VMEM (Cout, NB, S)  channel-major output
    cin2, nb, s = x_ref.shape
    cout = o_ref.shape[0]
    cin = cin2 // 2

    # Small-channel VPU path: Cout*2*Cin scalar-broadcast MACs on (NB, S) planes.
    # Per-channel reads stay as leading-axis ref slices inside the loop so they
    # pipeline through the vld slots instead of pinning the whole tile in vregs.
    for co in range(cout):
        base = co * cin2
        acc = jnp.full((nb, s), b_ref[co], dtype=jnp.float32)
        for ci in range(cin):
            acc = acc + x_ref[ci] * w_ref[base + ci]                 # even tap
            acc = acc + x_ref[cin + ci] * w_ref[base + cin + ci]     # odd tap
        # Dropout2d(p=0.2) is identity in eval mode; ReLU; cast only at store.
        o_ref[co] = jnp.maximum(acc, 0.0).astype(o_ref.dtype)


def _pick_block_batch(n, cin2, cout, s, target_bytes=2 << 20):
    """Batch-block size: ~2 MiB in+out tile, >=2 grid steps, (8,128) sublane rule."""
    per_sample = (cin2 + cout) * s * 4          # f32 bytes per sample (in + out)
    nb = max(1, target_bytes // per_sample)
    if nb >= n:
        return int(n)
    nb = min(nb, -(-n // 2))                    # keep >= 2 grid steps (megacore)
    if nb >= n:
        return int(n)
    nb = max(8, (nb // 8) * 8)                  # multiple of 8 when block != full dim
    return int(n) if nb >= n else int(nb)


def cnn_forward(x, params, *, padding=0, out_dtype=None, block_batch=None):
    """x: (N, Cin, H, W) float32, NCHW like PyTorch.  Returns (N, Cout, H_out, W)."""
    w, b, gamma, beta, run_mean, run_var = params
    if out_dtype is None:
        out_dtype = x.dtype
    N, Cin, H, W = x.shape
    Cout = w.shape[0]

    # Module uses padding=(padding, 0): pad only H.
    if padding:
        x = jnp.pad(x, ((0, 0), (0, 0), (padding, padding), (0, 0)))
        H = H + 2 * padding
    H_out = (H - 2) // 2 + 1
    S = H_out * W

    # Host-side tap split + channel-major, lane-dense pack (one fused XLA copy):
    # even rows -> channels [:Cin], odd rows -> channels [Cin:], spatial flattened
    # to S = H_out*W lanes.  If (padded) H is odd the last row never contributes.
    x_even = x[:, :, 0:2 * H_out:2, :]                           # (N, Cin, H_out, W)
    x_odd = x[:, :, 1:2 * H_out:2, :]                            # (N, Cin, H_out, W)
    x_taps = jnp.concatenate([x_even, x_odd], axis=1)            # (N, 2Cin, H_out, W)
    x_cm = jnp.transpose(x_taps.reshape(N, 2 * Cin, S),
                         (1, 0, 2)).astype(jnp.float32)          # (2Cin, N, S)

    # Host-side BN folding (+ conv bias): O(Cout*Cin) work, done once.
    scale = gamma * jax.lax.rsqrt(run_var + 1e-5)                # (Cout,)
    w0 = w[:, :, 0, 0] * scale[:, None]                          # (Cout, Cin)
    w1 = w[:, :, 1, 0] * scale[:, None]                          # (Cout, Cin)
    w_flat = jnp.concatenate([w0, w1], axis=1).reshape(-1).astype(jnp.float32)
    b_fold = ((b - run_mean) * scale + beta).astype(jnp.float32)  # (Cout,)

    nb = int(block_batch) if block_batch else _pick_block_batch(N, 2 * Cin, Cout, S)
    grid = pl.cdiv(N, nb)
    n_pad = grid * nb
    if n_pad != N:
        x_cm = jnp.pad(x_cm, ((0, 0), (0, n_pad - N), (0, 0)))

    out_cm = pl.pallas_call(
        _fused_conv_bn_relu_kernel,
        out_shape=jax.ShapeDtypeStruct((Cout, n_pad, S), out_dtype),
        grid_spec=pltpu.PrefetchScalarGridSpec(
            num_scalar_prefetch=2,                    # folded weights + bias in SMEM
            grid=(grid,),
            in_specs=[
                pl.BlockSpec((2 * Cin, nb, S), lambda n, w_r, b_r: (0, n, 0)),
            ],
            out_specs=pl.BlockSpec((Cout, nb, S), lambda n, w_r, b_r: (0, n, 0)),
        ),
        compiler_params=pltpu.CompilerParams(
            dimension_semantics=("parallel",)),
    )(w_flat, b_fold, x_cm)

    # Back to NCHW (free reshape after a small transpose over the output only).
    out = jnp.transpose(out_cm[:, :N, :], (1, 0, 2)).reshape(N, Cout, H_out, W)
    return out


def init_params(key, dim1, dim2):
    k1, k2, k3, k4, k5 = jax.random.split(key, 5)
    fan_in = dim1 * 2 * 1
    bound = 1.0 / jnp.sqrt(fan_in)
    w = jax.random.uniform(k1, (dim2, dim1, 2, 1), jnp.float32, -bound, bound)
    b = jax.random.uniform(k2, (dim2,), jnp.float32, -bound, bound)
    gamma = 1.0 + 0.1 * jax.random.normal(k3, (dim2,), jnp.float32)
    beta = 0.1 * jax.random.normal(k4, (dim2,), jnp.float32)
    run_mean = 0.05 * jax.random.normal(k5, (dim2,), jnp.float32)
    run_var = jnp.ones((dim2,), jnp.float32)
    return (w, b, gamma, beta, run_mean, run_var)


def reference_forward(x, params, padding=0):
    """Pure-JAX reference (eval mode), unfolded BN, for correctness check."""
    w, b, gamma, beta, run_mean, run_var = params
    if padding:
        x = jnp.pad(x, ((0, 0), (0, 0), (padding, padding), (0, 0)))
    H = x.shape[2]
    H_out = (H - 2) // 2 + 1
    x_even = x[:, :, 0:2 * H_out:2, :]
    x_odd = x[:, :, 1:2 * H_out:2, :]
    conv = (jnp.einsum("nchw,oc->nohw", x_even, w[:, :, 0, 0]) +
            jnp.einsum("nchw,oc->nohw", x_odd, w[:, :, 1, 0]) +
            b[None, :, None, None])
    bn = ((conv - run_mean[None, :, None, None]) /
          jnp.sqrt(run_var[None, :, None, None] + 1e-5) *
          gamma[None, :, None, None] + beta[None, :, None, None])
    return jnp.maximum(bn, 0.0)


if __name__ == "__main__":
    key = jax.random.PRNGKey(0)
    kx, kp = jax.random.split(key)

    N, Cin, H, W = 2, 4, 16, 16
    Cout = 4
    x = jax.random.normal(kx, (N, Cin, H, W), jnp.float32)
    params = init_params(kp, Cin, Cout)

    fwd = jax.jit(functools.partial(cnn_forward, padding=0))
    out = fwd(x, params)
    jax.block_until_ready(out)

    ref = reference_forward(x, params, padding=0)
    assert out.shape == (N, Cout, H // 2, W), out.shape
    assert jnp.allclose(out, ref, atol=1e-5, rtol=1e-5), \
        float(jnp.max(jnp.abs(out - ref)))

    print("KERNEL_OK")
</pallas_src>

<mosaic_0001>
module attributes {stable_mosaic.version = 11 : i64} {
  func.func @_fused_conv_bn_relu_kernel(%arg0: i32, %arg1: memref<32xf32, #tpu.memory_space<smem>>, %arg2: memref<4xf32, #tpu.memory_space<smem>>, %arg3: memref<8x2x128xf32, #tpu.memory_space<vmem>>, %arg4: memref<4x2x128xf32, #tpu.memory_space<vmem>>) attributes {dimension_semantics = [#tpu.dimension_semantics<parallel>], iteration_bounds = array<i64: 1>, scalar_prefetch = 2 : i64, scratch_operands = 0 : i64, tpu.core_type = #tpu.core_type<tc>, window_params = [{transform_indices = @transform_0, window_bounds = array<i64: 8, 2, 128>}, {transform_indices = @transform_1, window_bounds = array<i64: 4, 2, 128>}]} {
    %c0 = arith.constant 0 : index
    %0 = memref.load %arg2[%c0] : memref<4xf32, #tpu.memory_space<smem>>
    %1 = vector.broadcast %0 : f32 to vector<2x128xf32>
    %c0_0 = arith.constant 0 : index
    %c0_1 = arith.constant 0 : index
    %c0_2 = arith.constant 0 : index
    %2 = vector.load %arg3[%c0_0, %c0_1, %c0_2] : memref<8x2x128xf32, #tpu.memory_space<vmem>>, vector<1x2x128xf32>
    %3 = vector.shape_cast %2 : vector<1x2x128xf32> to vector<2x128xf32>
    %c0_3 = arith.constant 0 : index
    %4 = memref.load %arg1[%c0_3] : memref<32xf32, #tpu.memory_space<smem>>
    %5 = vector.broadcast %4 : f32 to vector<2x128xf32>
    %6 = arith.mulf %3, %5 : vector<2x128xf32>
    %7 = arith.addf %1, %6 : vector<2x128xf32>
    %c4 = arith.constant 4 : index
    %c0_4 = arith.constant 0 : index
    %c0_5 = arith.constant 0 : index
    %8 = vector.load %arg3[%c4, %c0_4, %c0_5] : memref<8x2x128xf32, #tpu.memory_space<vmem>>, vector<1x2x128xf32>
    %9 = vector.shape_cast %8 : vector<1x2x128xf32> to vector<2x128xf32>
    %c4_6 = arith.constant 4 : index
    %10 = memref.load %arg1[%c4_6] : memref<32xf32, #tpu.memory_space<smem>>
    %11 = vector.broadcast %10 : f32 to vector<2x128xf32>
    %12 = arith.mulf %9, %11 : vector<2x128xf32>
    %13 = arith.addf %7, %12 : vector<2x128xf32>
    %c1 = arith.constant 1 : index
    %c0_7 = arith.constant 0 : index
    %c0_8 = arith.constant 0 : index
    %14 = vector.load %arg3[%c1, %c0_7, %c0_8] : memref<8x2x128xf32, #tpu.memory_space<vmem>>, vector<1x2x128xf32>
    %15 = vector.shape_cast %14 : vector<1x2x128xf32> to vector<2x128xf32>
    %c1_9 = arith.constant 1 : index
    %16 = memref.load %arg1[%c1_9] : memref<32xf32, #tpu.memory_space<smem>>
    %17 = vector.broadcast %16 : f32 to vector<2x128xf32>
    %18 = arith.mulf %15, %17 : vector<2x128xf32>
    %19 = arith.addf %13, %18 : vector<2x128xf32>
    %c5 = arith.constant 5 : index
    %c0_10 = arith.constant 0 : index
    %c0_11 = arith.constant 0 : index
    %20 = vector.load %arg3[%c5, %c0_10, %c0_11] : memref<8x2x128xf32, #tpu.memory_space<vmem>>, vector<1x2x128xf32>
    %21 = vector.shape_cast %20 : vector<1x2x128xf32> to vector<2x128xf32>
    %c5_12 = arith.constant 5 : index
    %22 = memref.load %arg1[%c5_12] : memref<32xf32, #tpu.memory_space<smem>>
    %23 = vector.broadcast %22 : f32 to vector<2x128xf32>
    %24 = arith.mulf %21, %23 : vector<2x128xf32>
    %25 = arith.addf %19, %24 : vector<2x128xf32>
    %c2 = arith.constant 2 : index
    %c0_13 = arith.constant 0 : index
    %c0_14 = arith.constant 0 : index
    %26 = vector.load %arg3[%c2, %c0_13, %c0_14] : memref<8x2x128xf32, #tpu.memory_space<vmem>>, vector<1x2x128xf32>
    %27 = vector.shape_cast %26 : vector<1x2x128xf32> to vector<2x128xf32>
    %c2_15 = arith.constant 2 : index
    %28 = memref.load %arg1[%c2_15] : memref<32xf32, #tpu.memory_space<smem>>
    %29 = vector.broadcast %28 : f32 to vector<2x128xf32>
    %30 = arith.mulf %27, %29 : vector<2x128xf32>
    %31 = arith.addf %25, %30 : vector<2x128xf32>
    %c6 = arith.constant 6 : index
    %c0_16 = arith.constant 0 : index
    %c0_17 = arith.constant 0 : index
    %32 = vector.load %arg3[%c6, %c0_16, %c0_17] : memref<8x2x128xf32, #tpu.memory_space<vmem>>, vector<1x2x128xf32>
    %33 = vector.shape_cast %32 : vector<1x2x128xf32> to vector<2x128xf32>
    %c6_18 = arith.constant 6 : index
    %34 = memref.load %arg1[%c6_18] : memref<32xf32, #tpu.memory_space<smem>>
    %35 = vector.broadcast %34 : f32 to vector<2x128xf32>
    %36 = arith.mulf %33, %35 : vector<2x128xf32>
    %37 = arith.addf %31, %36 : vector<2x128xf32>
    %c3 = arith.constant 3 : index
    %c0_19 = arith.constant 0 : index
    %c0_20 = arith.constant 0 : index
    %38 = vector.load %arg3[%c3, %c0_19, %c0_20] : memref<8x2x128xf32, #tpu.memory_space<vmem>>, vector<1x2x128xf32>
    %39 = vector.shape_cast %38 : vector<1x2x128xf32> to vector<2x128xf32>
    %c3_21 = arith.constant 3 : index
    %40 = memref.load %arg1[%c3_21] : memref<32xf32, #tpu.memory_space<smem>>
    %41 = vector.broadcast %40 : f32 to vector<2x128xf32>
    %42 = arith.mulf %39, %41 : vector<2x128xf32>
    %43 = arith.addf %37, %42 : vector<2x128xf32>
    %c7 = arith.constant 7 : index
    %c0_22 = arith.constant 0 : index
    %c0_23 = arith.constant 0 : index
    %44 = vector.load %arg3[%c7, %c0_22, %c0_23] : memref<8x2x128xf32, #tpu.memory_space<vmem>>, vector<1x2x128xf32>
    %45 = vector.shape_cast %44 : vector<1x2x128xf32> to vector<2x128xf32>
    %c7_24 = arith.constant 7 : index
    %46 = memref.load %arg1[%c7_24] : memref<32xf32, #tpu.memory_space<smem>>
    %47 = vector.broadcast %46 : f32 to vector<2x128xf32>
    %48 = arith.mulf %45, %47 : vector<2x128xf32>
    %49 = arith.addf %43, %48 : vector<2x128xf32>
    %cst = arith.constant 0.000000e+00 : f32
    %50 = vector.broadcast %cst : f32 to vector<2x128xf32>
    %51 = arith.maximumf %49, %50 : vector<2x128xf32>
    %c0_25 = arith.constant 0 : index
    %c0_26 = arith.constant 0 : index
    %c0_27 = arith.constant 0 : index
    %52 = vector.load %arg4[%c0_25, %c0_26, %c0_27] : memref<4x2x128xf32, #tpu.memory_space<vmem>>, vector<1x2x128xf32>
    %53 = vector.shape_cast %52 : vector<1x2x128xf32> to vector<2x128xf32>
    %54 = vector.shape_cast %51 : vector<2x128xf32> to vector<1x2x128xf32>
    tpu.vector_store %arg4[%c0_25, %c0_26, %c0_27], %54 {strides = array<i32>} : memref<4x2x128xf32, #tpu.memory_space<vmem>>, vector<1x2x128xf32>,
    %c1_28 = arith.constant 1 : index
    %55 = memref.load %arg2[%c1_28] : memref<4xf32, #tpu.memory_space<smem>>
    %56 = vector.broadcast %55 : f32 to vector<2x128xf32>
    %c0_29 = arith.constant 0 : index
    %c0_30 = arith.constant 0 : index
    %c0_31 = arith.constant 0 : index
    %57 = vector.load %arg3[%c0_29, %c0_30, %c0_31] : memref<8x2x128xf32, #tpu.memory_space<vmem>>, vector<1x2x128xf32>
    %58 = vector.shape_cast %57 : vector<1x2x128xf32> to vector<2x128xf32>
    %c8 = arith.constant 8 : index
    %59 = memref.load %arg1[%c8] : memref<32xf32, #tpu.memory_space<smem>>
    %60 = vector.broadcast %59 : f32 to vector<2x128xf32>
    %61 = arith.mulf %58, %60 : vector<2x128xf32>
    %62 = arith.addf %56, %61 : vector<2x128xf32>
    %c4_32 = arith.constant 4 : index
    %c0_33 = arith.constant 0 : index
    %c0_34 = arith.constant 0 : index
    %63 = vector.load %arg3[%c4_32, %c0_33, %c0_34] : memref<8x2x128xf32, #tpu.memory_space<vmem>>, vector<1x2x128xf32>
    %64 = vector.shape_cast %63 : vector<1x2x128xf32> to vector<2x128xf32>
    %c12 = arith.constant 12 : index
    %65 = memref.load %arg1[%c12] : memref<32xf32, #tpu.memory_space<smem>>
    %66 = vector.broadcast %65 : f32 to vector<2x128xf32>
    %67 = arith.mulf %64, %66 : vector<2x128xf32>
    %68 = arith.addf %62, %67 : vector<2x128xf32>
    %c1_35 = arith.constant 1 : index
    %c0_36 = arith.constant 0 : index
    %c0_37 = arith.constant 0 : index
    %69 = vector.load %arg3[%c1_35, %c0_36, %c0_37] : memref<8x2x128xf32, #tpu.memory_space<vmem>>, vector<1x2x128xf32>
    %70 = vector.shape_cast %69 : vector<1x2x128xf32> to vector<2x128xf32>
    %c9 = arith.constant 9 : index
    %71 = memref.load %arg1[%c9] : memref<32xf32, #tpu.memory_space<smem>>
    %72 = vector.broadcast %71 : f32 to vector<2x128xf32>
    %73 = arith.mulf %70, %72 : vector<2x128xf32>
    %74 = arith.addf %68, %73 : vector<2x128xf32>
    %c5_38 = arith.constant 5 : index
    %c0_39 = arith.constant 0 : index
    %c0_40 = arith.constant 0 : index
    %75 = vector.load %arg3[%c5_38, %c0_39, %c0_40] : memref<8x2x128xf32, #tpu.memory_space<vmem>>, vector<1x2x128xf32>
    %76 = vector.shape_cast %75 : vector<1x2x128xf32> to vector<2x128xf32>
    %c13 = arith.constant 13 : index
    %77 = memref.load %arg1[%c13] : memref<32xf32, #tpu.memory_space<smem>>
    %78 = vector.broadcast %77 : f32 to vector<2x128xf32>
    %79 = arith.mulf %76, %78 : vector<2x128xf32>
    %80 = arith.addf %74, %79 : vector<2x128xf32>
    %c2_41 = arith.constant 2 : index
    %c0_42 = arith.constant 0 : index
    %c0_43 = arith.constant 0 : index
    %81 = vector.load %arg3[%c2_41, %c0_42, %c0_43] : memref<8x2x128xf32, #tpu.memory_space<vmem>>, vector<1x2x128xf32>
    %82 = vector.shape_cast %81 : vector<1x2x128xf32> to vector<2x128xf32>
    %c10 = arith.constant 10 : index
    %83 = memref.load %arg1[%c10] : memref<32xf32, #tpu.memory_space<smem>>
    %84 = vector.broadcast %83 : f32 to vector<2x128xf32>
    %85 = arith.mulf %82, %84 : vector<2x128xf32>
    %86 = arith.addf %80, %85 : vector<2x128xf32>
    %c6_44 = arith.constant 6 : index
    %c0_45 = arith.constant 0 : index
    %c0_46 = arith.constant 0 : index
    %87 = vector.load %arg3[%c6_44, %c0_45, %c0_46] : memref<8x2x128xf32, #tpu.memory_space<vmem>>, vector<1x2x128xf32>
    %88 = vector.shape_cast %87 : vector<1x2x128xf32> to vector<2x128xf32>
    %c14 = arith.constant 14 : index
    %89 = memref.load %arg1[%c14] : memref<32xf32, #tpu.memory_space<smem>>
    %90 = vector.broadcast %89 : f32 to vector<2x128xf32>
    %91 = arith.mulf %88, %90 : vector<2x128xf32>
    %92 = arith.addf %86, %91 : vector<2x128xf32>
    %c3_47 = arith.constant 3 : index
    %c0_48 = arith.constant 0 : index
    %c0_49 = arith.constant 0 : index
    %93 = vector.load %arg3[%c3_47, %c0_48, %c0_49] : memref<8x2x128xf32, #tpu.memory_space<vmem>>, vector<1x2x128xf32>
    %94 = vector.shape_cast %93 : vector<1x2x128xf32> to vector<2x128xf32>
    %c11 = arith.constant 11 : index
    %95 = memref.load %arg1[%c11] : memref<32xf32, #tpu.memory_space<smem>>
    %96 = vector.broadcast %95 : f32 to vector<2x128xf32>
    %97 = arith.mulf %94, %96 : vector<2x128xf32>
    %98 = arith.addf %92, %97 : vector<2x128xf32>
    %c7_50 = arith.constant 7 : index
    %c0_51 = arith.constant 0 : index
    %c0_52 = arith.constant 0 : index
    %99 = vector.load %arg3[%c7_50, %c0_51, %c0_52] : memref<8x2x128xf32, #tpu.memory_space<vmem>>, vector<1x2x128xf32>
    %100 = vector.shape_cast %99 : vector<1x2x128xf32> to vector<2x128xf32>
    %c15 = arith.constant 15 : index
    %101 = memref.load %arg1[%c15] : memref<32xf32, #tpu.memory_space<smem>>
    %102 = vector.broadcast %101 : f32 to vector<2x128xf32>
    %103 = arith.mulf %100, %102 : vector<2x128xf32>
    %104 = arith.addf %98, %103 : vector<2x128xf32>
    %cst_53 = arith.constant 0.000000e+00 : f32
    %105 = vector.broadcast %cst_53 : f32 to vector<2x128xf32>
    %106 = arith.maximumf %104, %105 : vector<2x128xf32>
    %c1_54 = arith.constant 1 : index
    %c0_55 = arith.constant 0 : index
    %c0_56 = arith.constant 0 : index
    %107 = vector.load %arg4[%c1_54, %c0_55, %c0_56] : memref<4x2x128xf32, #tpu.memory_space<vmem>>, vector<1x2x128xf32>
    %108 = vector.shape_cast %107 : vector<1x2x128xf32> to vector<2x128xf32>
    %109 = vector.shape_cast %106 : vector<2x128xf32> to vector<1x2x128xf32>
    tpu.vector_store %arg4[%c1_54, %c0_55, %c0_56], %109 {strides = array<i32>} : memref<4x2x128xf32, #tpu.memory_space<vmem>>, vector<1x2x128xf32>,
    %c2_57 = arith.constant 2 : index
    %110 = memref.load %arg2[%c2_57] : memref<4xf32, #tpu.memory_space<smem>>
    %111 = vector.broadcast %110 : f32 to vector<2x128xf32>
    %c0_58 = arith.constant 0 : index
    %c0_59 = arith.constant 0 : index
    %c0_60 = arith.constant 0 : index
    %112 = vector.load %arg3[%c0_58, %c0_59, %c0_60] : memref<8x2x128xf32, #tpu.memory_space<vmem>>, vector<1x2x128xf32>
    %113 = vector.shape_cast %112 : vector<1x2x128xf32> to vector<2x128xf32>
    %c16 = arith.constant 16 : index
    %114 = memref.load %arg1[%c16] : memref<32xf32, #tpu.memory_space<smem>>
    %115 = vector.broadcast %114 : f32 to vector<2x128xf32>
    %116 = arith.mulf %113, %115 : vector<2x128xf32>
    %117 = arith.addf %111, %116 : vector<2x128xf32>
    %c4_61 = arith.constant 4 : index
    %c0_62 = arith.constant 0 : index
    %c0_63 = arith.constant 0 : index
    %118 = vector.load %arg3[%c4_61, %c0_62, %c0_63] : memref<8x2x128xf32, #tpu.memory_space<vmem>>, vector<1x2x128xf32>
    %119 = vector.shape_cast %118 : vector<1x2x128xf32> to vector<2x128xf32>
    %c20 = arith.constant 20 : index
    %120 = memref.load %arg1[%c20] : memref<32xf32, #tpu.memory_space<smem>>
    %121 = vector.broadcast %120 : f32 to vector<2x128xf32>
    %122 = arith.mulf %119, %121 : vector<2x128xf32>
    %123 = arith.addf %117, %122 : vector<2x128xf32>
    %c1_64 = arith.constant 1 : index
    %c0_65 = arith.constant 0 : index
    %c0_66 = arith.constant 0 : index
    %124 = vector.load %arg3[%c1_64, %c0_65, %c0_66] : memref<8x2x128xf32, #tpu.memory_space<vmem>>, vector<1x2x128xf32>
    %125 = vector.shape_cast %124 : vector<1x2x128xf32> to vector<2x128xf32>
    %c17 = arith.constant 17 : index
    %126 = memref.load %arg1[%c17] : memref<32xf32, #tpu.memory_space<smem>>
    %127 = vector.broadcast %126 : f32 to vector<2x128xf32>
    %128 = arith.mulf %125, %127 : vector<2x128xf32>
    %129 = arith.addf %123, %128 : vector<2x128xf32>
    %c5_67 = arith.constant 5 : index
    %c0_68 = arith.constant 0 : index
    %c0_69 = arith.constant 0 : index
    %130 = vector.load %arg3[%c5_67, %c0_68, %c0_69] : memref<8x2x128xf32, #tpu.memory_space<vmem>>, vector<1x2x128xf32>
    %131 = vector.shape_cast %130 : vector<1x2x128xf32> to vector<2x128xf32>
    %c21 = arith.constant 21 : index
    %132 = memref.load %arg1[%c21] : memref<32xf32, #tpu.memory_space<smem>>
    %133 = vector.broadcast %132 : f32 to vector<2x128xf32>
    %134 = arith.mulf %131, %133 : vector<2x128xf32>
    %135 = arith.addf %129, %134 : vector<2x128xf32>
    %c2_70 = arith.constant 2 : index
    %c0_71 = arith.constant 0 : index
    %c0_72 = arith.constant 0 : index
    %136 = vector.load %arg3[%c2_70, %c0_71, %c0_72] : memref<8x2x128xf32, #tpu.memory_space<vmem>>, vector<1x2x128xf32>
    %137 = vector.shape_cast %136 : vector<1x2x128xf32> to vector<2x128xf32>
    %c18 = arith.constant 18 : index
    %138 = memref.load %arg1[%c18] : memref<32xf32, #tpu.memory_space<smem>>
    %139 = vector.broadcast %138 : f32 to vector<2x128xf32>
    %140 = arith.mulf %137, %139 : vector<2x128xf32>
    %141 = arith.addf %135, %140 : vector<2x128xf32>
    %c6_73 = arith.constant 6 : index
    %c0_74 = arith.constant 0 : index
    %c0_75 = arith.constant 0 : index
    %142 = vector.load %arg3[%c6_73, %c0_74, %c0_75] : memref<8x2x128xf32, #tpu.memory_space<vmem>>, vector<1x2x128xf32>
    %143 = vector.shape_cast %142 : vector<1x2x128xf32> to vector<2x128xf32>
    %c22 = arith.constant 22 : index
    %144 = memref.load %arg1[%c22] : memref<32xf32, #tpu.memory_space<smem>>
    %145 = vector.broadcast %144 : f32 to vector<2x128xf32>
    %146 = arith.mulf %143, %145 : vector<2x128xf32>
    %147 = arith.addf %141, %146 : vector<2x128xf32>
    %c3_76 = arith.constant 3 : index
    %c0_77 = arith.constant 0 : index
    %c0_78 = arith.constant 0 : index
    %148 = vector.load %arg3[%c3_76, %c0_77, %c0_78] : memref<8x2x128xf32, #tpu.memory_space<vmem>>, vector<1x2x128xf32>
    %149 = vector.shape_cast %148 : vector<1x2x128xf32> to vector<2x128xf32>
    %c19 = arith.constant 19 : index
    %150 = memref.load %arg1[%c19] : memref<32xf32, #tpu.memory_space<smem>>
    %151 = vector.broadcast %150 : f32 to vector<2x128xf32>
    %152 = arith.mulf %149, %151 : vector<2x128xf32>
    %153 = arith.addf %147, %152 : vector<2x128xf32>
    %c7_79 = arith.constant 7 : index
    %c0_80 = arith.constant 0 : index
    %c0_81 = arith.constant 0 : index
    %154 = vector.load %arg3[%c7_79, %c0_80, %c0_81] : memref<8x2x128xf32, #tpu.memory_space<vmem>>, vector<1x2x128xf32>
    %155 = vector.shape_cast %154 : vector<1x2x128xf32> to vector<2x128xf32>
    %c23 = arith.constant 23 : index
    %156 = memref.load %arg1[%c23] : memref<32xf32, #tpu.memory_space<smem>>
    %157 = vector.broadcast %156 : f32 to vector<2x128xf32>
    %158 = arith.mulf %155, %157 : vector<2x128xf32>
    %159 = arith.addf %153, %158 : vector<2x128xf32>
    %cst_82 = arith.constant 0.000000e+00 : f32
    %160 = vector.broadcast %cst_82 : f32 to vector<2x128xf32>
    %161 = arith.maximumf %159, %160 : vector<2x128xf32>
    %c2_83 = arith.constant 2 : index
    %c0_84 = arith.constant 0 : index
    %c0_85 = arith.constant 0 : index
    %162 = vector.load %arg4[%c2_83, %c0_84, %c0_85] : memref<4x2x128xf32, #tpu.memory_space<vmem>>, vector<1x2x128xf32>
    %163 = vector.shape_cast %162 : vector<1x2x128xf32> to vector<2x128xf32>
    %164 = vector.shape_cast %161 : vector<2x128xf32> to vector<1x2x128xf32>
    tpu.vector_store %arg4[%c2_83, %c0_84, %c0_85], %164 {strides = array<i32>} : memref<4x2x128xf32, #tpu.memory_space<vmem>>, vector<1x2x128xf32>,
    %c3_86 = arith.constant 3 : index
    %165 = memref.load %arg2[%c3_86] : memref<4xf32, #tpu.memory_space<smem>>
    %166 = vector.broadcast %165 : f32 to vector<2x128xf32>
    %c0_87 = arith.constant 0 : index
    %c0_88 = arith.constant 0 : index
    %c0_89 = arith.constant 0 : index
    %167 = vector.load %arg3[%c0_87, %c0_88, %c0_89] : memref<8x2x128xf32, #tpu.memory_space<vmem>>, vector<1x2x128xf32>
    %168 = vector.shape_cast %167 : vector<1x2x128xf32> to vector<2x128xf32>
    %c24 = arith.constant 24 : index
    %169 = memref.load %arg1[%c24] : memref<32xf32, #tpu.memory_space<smem>>
    %170 = vector.broadcast %169 : f32 to vector<2x128xf32>
    %171 = arith.mulf %168, %170 : vector<2x128xf32>
    %172 = arith.addf %166, %171 : vector<2x128xf32>
    %c4_90 = arith.constant 4 : index
    %c0_91 = arith.constant 0 : index
    %c0_92 = arith.constant 0 : index
    %173 = vector.load %arg3[%c4_90, %c0_91, %c0_92] : memref<8x2x128xf32, #tpu.memory_space<vmem>>, vector<1x2x128xf32>
    %174 = vector.shape_cast %173 : vector<1x2x128xf32> to vector<2x128xf32>
    %c28 = arith.constant 28 : index
    %175 = memref.load %arg1[%c28] : memref<32xf32, #tpu.memory_space<smem>>
    %176 = vector.broadcast %175 : f32 to vector<2x128xf32>
    %177 = arith.mulf %174, %176 : vector<2x128xf32>
    %178 = arith.addf %172, %177 : vector<2x128xf32>
    %c1_93 = arith.constant 1 : index
    %c0_94 = arith.constant 0 : index
    %c0_95 = arith.constant 0 : index
    %179 = vector.load %arg3[%c1_93, %c0_94, %c0_95] : memref<8x2x128xf32, #tpu.memory_space<vmem>>, vector<1x2x128xf32>
    %180 = vector.shape_cast %179 : vector<1x2x128xf32> to vector<2x128xf32>
    %c25 = arith.constant 25 : index
    %181 = memref.load %arg1[%c25] : memref<32xf32, #tpu.memory_space<smem>>
    %182 = vector.broadcast %181 : f32 to vector<2x128xf32>
    %183 = arith.mulf %180, %182 : vector<2x128xf32>
    %184 = arith.addf %178, %183 : vector<2x128xf32>
    %c5_96 = arith.constant 5 : index
    %c0_97 = arith.constant 0 : index
    %c0_98 = arith.constant 0 : index
    %185 = vector.load %arg3[%c5_96, %c0_97, %c0_98] : memref<8x2x128xf32, #tpu.memory_space<vmem>>, vector<1x2x128xf32>
    %186 = vector.shape_cast %185 : vector<1x2x128xf32> to vector<2x128xf32>
    %c29 = arith.constant 29 : index
    %187 = memref.load %arg1[%c29] : memref<32xf32, #tpu.memory_space<smem>>
    %188 = vector.broadcast %187 : f32 to vector<2x128xf32>
    %189 = arith.mulf %186, %188 : vector<2x128xf32>
    %190 = arith.addf %184, %189 : vector<2x128xf32>
    %c2_99 = arith.constant 2 : index
    %c0_100 = arith.constant 0 : index
    %c0_101 = arith.constant 0 : index
    %191 = vector.load %arg3[%c2_99, %c0_100, %c0_101] : memref<8x2x128xf32, #tpu.memory_space<vmem>>, vector<1x2x128xf32>
    %192 = vector.shape_cast %191 : vector<1x2x128xf32> to vector<2x128xf32>
    %c26 = arith.constant 26 : index
    %193 = memref.load %arg1[%c26] : memref<32xf32, #tpu.memory_space<smem>>
    %194 = vector.broadcast %193 : f32 to vector<2x128xf32>
    %195 = arith.mulf %192, %194 : vector<2x128xf32>
    %196 = arith.addf %190, %195 : vector<2x128xf32>
    %c6_102 = arith.constant 6 : index
    %c0_103 = arith.constant 0 : index
    %c0_104 = arith.constant 0 : index
    %197 = vector.load %arg3[%c6_102, %c0_103, %c0_104] : memref<8x2x128xf32, #tpu.memory_space<vmem>>, vector<1x2x128xf32>
    %198 = vector.shape_cast %197 : vector<1x2x128xf32> to vector<2x128xf32>
    %c30 = arith.constant 30 : index
    %199 = memref.load %arg1[%c30] : memref<32xf32, #tpu.memory_space<smem>>
    %200 = vector.broadcast %199 : f32 to vector<2x128xf32>
    %201 = arith.mulf %198, %200 : vector<2x128xf32>
    %202 = arith.addf %196, %201 : vector<2x128xf32>
    %c3_105 = arith.constant 3 : index
    %c0_106 = arith.constant 0 : index
    %c0_107 = arith.constant 0 : index
    %203 = vector.load %arg3[%c3_105, %c0_106, %c0_107] : memref<8x2x128xf32, #tpu.memory_space<vmem>>, vector<1x2x128xf32>
    %204 = vector.shape_cast %203 : vector<1x2x128xf32> to vector<2x128xf32>
    %c27 = arith.constant 27 : index
    %205 = memref.load %arg1[%c27] : memref<32xf32, #tpu.memory_space<smem>>
    %206 = vector.broadcast %205 : f32 to vector<2x128xf32>
    %207 = arith.mulf %204, %206 : vector<2x128xf32>
    %208 = arith.addf %202, %207 : vector<2x128xf32>
    %c7_108 = arith.constant 7 : index
    %c0_109 = arith.constant 0 : index
    %c0_110 = arith.constant 0 : index
    %209 = vector.load %arg3[%c7_108, %c0_109, %c0_110] : memref<8x2x128xf32, #tpu.memory_space<vmem>>, vector<1x2x128xf32>
    %210 = vector.shape_cast %209 : vector<1x2x128xf32> to vector<2x128xf32>
    %c31 = arith.constant 31 : index
    %211 = memref.load %arg1[%c31] : memref<32xf32, #tpu.memory_space<smem>>
    %212 = vector.broadcast %211 : f32 to vector<2x128xf32>
    %213 = arith.mulf %210, %212 : vector<2x128xf32>
    %214 = arith.addf %208, %213 : vector<2x128xf32>
    %cst_111 = arith.constant 0.000000e+00 : f32
    %215 = vector.broadcast %cst_111 : f32 to vector<2x128xf32>
    %216 = arith.maximumf %214, %215 : vector<2x128xf32>
    %c3_112 = arith.constant 3 : index
    %c0_113 = arith.constant 0 : index
    %c0_114 = arith.constant 0 : index
    %217 = vector.load %arg4[%c3_112, %c0_113, %c0_114] : memref<4x2x128xf32, #tpu.memory_space<vmem>>, vector<1x2x128xf32>
    %218 = vector.shape_cast %217 : vector<1x2x128xf32> to vector<2x128xf32>
    %219 = vector.shape_cast %216 : vector<2x128xf32> to vector<1x2x128xf32>
    tpu.vector_store %arg4[%c3_112, %c0_113, %c0_114], %219 {strides = array<i32>} : memref<4x2x128xf32, #tpu.memory_space<vmem>>, vector<1x2x128xf32>,
    return
  }
  func.func @transform_0(%arg0: i32, %arg1: memref<32xf32, #tpu.memory_space<smem>>, %arg2: memref<4xf32, #tpu.memory_space<smem>>) -> (i32, i32, i32) {
    %c0_i32 = arith.constant 0 : i32
    %c0_i32_0 = arith.constant 0 : i32
    %c0_i32_1 = arith.constant 0 : i32
    return %c0_i32, %arg0, %c0_i32_0 : i32, i32, i32
  }
  func.func @transform_1(%arg0: i32, %arg1: memref<32xf32, #tpu.memory_space<smem>>, %arg2: memref<4xf32, #tpu.memory_space<smem>>) -> (i32, i32, i32) {
    %c0_i32 = arith.constant 0 : i32
    %c0_i32_0 = arith.constant 0 : i32
    %c0_i32_1 = arith.constant 0 : i32
    return %c0_i32, %arg0, %c0_i32_0 : i32, i32, i32
  }
}

</mosaic_0001>

<llo_original>
// kernel: cnn_forward.1
$region0: #{cnn_forward.1}
  #allocation0 [shape = 'u32[]', space=smem, size = 0x4, offset = 0x4, fixed_abs, tag = 'smem constant byte address 0x4 - core index']
  #allocation1 [shape = 'u32[144,128]{1,0:T(1,128)}', space=vmem, size = 0x12000, scoped, tag = 'internal scratch']
  #allocation2 [shape = 's32[1]{0}', space=sflag, size = 0x4, scoped, tag = 'scoped memory for cnn_forward.1']
  #allocation3 [shape = 'u8[512]{0}', space=smem, size = 0x200, scoped, tag = 'prefetched SMEM operand 0']
  #allocation4 [shape = 'u8[512]{0}', space=smem, size = 0x200, scoped, tag = 'prefetched SMEM operand 1']
  %s0 = inlined_call_operand.vmem [shape: f32[32], index: 0, kind: input, shape index: {}]
  %s1 = inlined_call_operand.vmem [shape: f32[4], index: 1, kind: input, shape index: {}]
  %s2 = inlined_call_operand.vmem [shape: f32[8,2,128], index: 2, kind: input, shape index: {}]
  %s3 = inlined_call_operand.vmem [shape: f32[4,2,128], index: 3, kind: output, shape index: {}]
  %s4 = sld [smem:[#allocation0]]
  $region14: #{cnn_forward.1} parent=0
    _
  %s6 = ssub.s32 1, %s4
  %s7 = scalar_select 0, %s6, %s4
  %s8 = sshll.u32 %s0, 4
  %s9 = int_to_ptr.vmem [resolvable:$true] %s8
  %11 = dma.vmem_to_smem %s9, 16, [#allocation3], [#allocation2]
  %s12 = sshll.u32 %s1, 4
  %s13 = int_to_ptr.vmem [resolvable:$true] %s12
  %15 = dma.vmem_to_smem %s13, 16, [#allocation4], [#allocation2]
  %16 = dma.done [#allocation2], 32
  %17 = sfence
  // Predicated region
  $region2: #{cnn_forward.1} parent=0 // pred_check
    _
  $region3: #{cnn_forward.1} parent=0 // pred_check_branch
    %19 = sbr.rel (0) target = $region5
  $region4: #{cnn_forward.1} parent=0 // pred_region
    _
  $region5: #{cnn_forward.1} parent=0 // pred_fallthru
    _
  %s20 = sld [smem:[#allocation4]]
  %v21 = vstv %s20
  %v22 = vld [vmem:[%s2] sm:$0x3]
  %s23 = sld [smem:[#allocation3]]
  %v24 = vstv %s23
  %v25 = vmul.f32 %v22, %v24
  %v26 = vadd.f32 %v21, %v25
  %s27 = scalar_lea.vmem %s2, 8
  %v28 = vld [vmem:[%s27] sm:$0x3]
  %s29 = sld [smem:[#allocation3 + $0x4]]
  %v30 = vstv %s29
  %v31 = vmul.f32 %v28, %v30
  %v32 = vadd.f32 %v26, %v31
  %s33 = scalar_lea.vmem %s2, 2
  %v34 = vld [vmem:[%s33] sm:$0x3]
  %s35 = sld [smem:[#allocation3 + $0x1]]
  %v36 = vstv %s35
  %v37 = vmul.f32 %v34, %v36
  %v38 = vadd.f32 %v32, %v37
  %s39 = scalar_lea.vmem %s2, 10
  %v40 = vld [vmem:[%s39] sm:$0x3]
  %s41 = sld [smem:[#allocation3 + $0x5]]
  %v42 = vstv %s41
  %v43 = vmul.f32 %v40, %v42
  %v44 = vadd.f32 %v38, %v43
  %s45 = scalar_lea.vmem %s2, 4
  %v46 = vld [vmem:[%s45] sm:$0x3]
  %s47 = sld [smem:[#allocation3 + $0x2]]
  %v48 = vstv %s47
  %v49 = vmul.f32 %v46, %v48
  %v50 = vadd.f32 %v44, %v49
  %s51 = scalar_lea.vmem %s2, 12
  %v52 = vld [vmem:[%s51] sm:$0x3]
  %s53 = sld [smem:[#allocation3 + $0x6]]
  %v54 = vstv %s53
  %v55 = vmul.f32 %v52, %v54
  %v56 = vadd.f32 %v50, %v55
  %s57 = scalar_lea.vmem %s2, 6
  %v58 = vld [vmem:[%s57] sm:$0x3]
  %s59 = sld [smem:[#allocation3 + $0x3]]
  %v60 = vstv %s59
  %v61 = vmul.f32 %v58, %v60
  %v62 = vadd.f32 %v56, %v61
  %s63 = scalar_lea.vmem %s2, 14
  %v64 = vld [vmem:[%s63] sm:$0x3]
  %s65 = sld [smem:[#allocation3 + $0x7]]
  %v66 = vstv %s65
  %v67 = vmul.f32 %v64, %v66
  %v68 = vadd.f32 %v62, %v67
  %v69 = vmax.f32 %v68, 0.0
  %70 = vst [vmem:[%s3] sm:$0x3] %v69
  %s71 = sld [smem:[#allocation4 + $0x1]]
  %v72 = vstv %s71
  %v73 = vld [vmem:[%s2] sm:$0x3]
  %s74 = sld [smem:[#allocation3 + $0x8]]
  %v75 = vstv %s74
  %v76 = vmul.f32 %v73, %v75
  %v77 = vadd.f32 %v72, %v76
  %v78 = vld [vmem:[%s27] sm:$0x3]
  %s79 = sld [smem:[#allocation3 + $0xc]]
  %v80 = vstv %s79
  %v81 = vmul.f32 %v78, %v80
  %v82 = vadd.f32 %v77, %v81
  %v83 = vld [vmem:[%s33] sm:$0x3]
  %s84 = sld [smem:[#allocation3 + $0x9]]
  %v85 = vstv %s84
  %v86 = vmul.f32 %v83, %v85
  %v87 = vadd.f32 %v82, %v86
  %v88 = vld [vmem:[%s39] sm:$0x3]
  %s89 = sld [smem:[#allocation3 + $0xd]]
  %v90 = vstv %s89
  %v91 = vmul.f32 %v88, %v90
  %v92 = vadd.f32 %v87, %v91
  %v93 = vld [vmem:[%s45] sm:$0x3]
  %s94 = sld [smem:[#allocation3 + $0xa]]
  %v95 = vstv %s94
  %v96 = vmul.f32 %v93, %v95
  %v97 = vadd.f32 %v92, %v96
  %v98 = vld [vmem:[%s51] sm:$0x3]
  %s99 = sld [smem:[#allocation3 + $0xe]]
  %v100 = vstv %s99
  %v101 = vmul.f32 %v98, %v100
  %v102 = vadd.f32 %v97, %v101
  %v103 = vld [vmem:[%s57] sm:$0x3]
  %s104 = sld [smem:[#allocation3 + $0xb]]
  %v105 = vstv %s104
  %v106 = vmul.f32 %v103, %v105
  %v107 = vadd.f32 %v102, %v106
  %v108 = vld [vmem:[%s63] sm:$0x3]
  %s109 = sld [smem:[#allocation3 + $0xf]]
  %v110 = vstv %s109
  %v111 = vmul.f32 %v108, %v110
  %v112 = vadd.f32 %v107, %v111
  %v113 = vmax.f32 %v112, 0.0
  %s114 = scalar_lea.vmem %s3, 2
  %115 = vst [vmem:[%s114] sm:$0x3] %v113
  %s116 = sld [smem:[#allocation4 + $0x2]]
  %v117 = vstv %s116
  %v118 = vld [vmem:[%s2] sm:$0x3]
  %s119 = sld [smem:[#allocation3 + $0x10]]
  %v120 = vstv %s119
  %v121 = vmul.f32 %v118, %v120
  %v122 = vadd.f32 %v117, %v121
  %v123 = vld [vmem:[%s27] sm:$0x3]
  %s124 = sld [smem:[#allocation3 + $0x14]]
  %v125 = vstv %s124
  %v126 = vmul.f32 %v123, %v125
  %v127 = vadd.f32 %v122, %v126
  %v128 = vld [vmem:[%s33] sm:$0x3]
  %s129 = sld [smem:[#allocation3 + $0x11]]
  %v130 = vstv %s129
  %v131 = vmul.f32 %v128, %v130
  %v132 = vadd.f32 %v127, %v131
  %v133 = vld [vmem:[%s39] sm:$0x3]
  %s134 = sld [smem:[#allocation3 + $0x15]]
  %v135 = vstv %s134
  %v136 = vmul.f32 %v133, %v135
  %v137 = vadd.f32 %v132, %v136
  %v138 = vld [vmem:[%s45] sm:$0x3]
  %s139 = sld [smem:[#allocation3 + $0x12]]
  %v140 = vstv %s139
  %v141 = vmul.f32 %v138, %v140
  %v142 = vadd.f32 %v137, %v141
  %v143 = vld [vmem:[%s51] sm:$0x3]
  %s144 = sld [smem:[#allocation3 + $0x16]]
  %v145 = vstv %s144
  %v146 = vmul.f32 %v143, %v145
  %v147 = vadd.f32 %v142, %v146
  %v148 = vld [vmem:[%s57] sm:$0x3]
  %s149 = sld [smem:[#allocation3 + $0x13]]
  %v150 = vstv %s149
  %v151 = vmul.f32 %v148, %v150
  %v152 = vadd.f32 %v147, %v151
  %v153 = vld [vmem:[%s63] sm:$0x3]
  %s154 = sld [smem:[#allocation3 + $0x17]]
  %v155 = vstv %s154
  %v156 = vmul.f32 %v153, %v155
  %v157 = vadd.f32 %v152, %v156
  %v158 = vmax.f32 %v157, 0.0
  %s159 = scalar_lea.vmem %s3, 4
  %160 = vst [vmem:[%s159] sm:$0x3] %v158
  %s161 = sld [smem:[#allocation4 + $0x3]]
  %v162 = vstv %s161
  %v163 = vld [vmem:[%s2] sm:$0x3]
  %s164 = sld [smem:[#allocation3 + $0x18]]
  %v165 = vstv %s164
  %v166 = vmul.f32 %v163, %v165
  %v167 = vadd.f32 %v162, %v166
  %v168 = vld [vmem:[%s27] sm:$0x3]
  %s169 = sld [smem:[#allocation3 + $0x1c]]
  %v170 = vstv %s169
  %v171 = vmul.f32 %v168, %v170
  %v172 = vadd.f32 %v167, %v171
  %v173 = vld [vmem:[%s33] sm:$0x3]
  %s174 = sld [smem:[#allocation3 + $0x19]]
  %v175 = vstv %s174
  %v176 = vmul.f32 %v173, %v175
  %v177 = vadd.f32 %v172, %v176
  %v178 = vld [vmem:[%s39] sm:$0x3]
  %s179 = sld [smem:[#allocation3 + $0x1d]]
  %v180 = vstv %s179
  %v181 = vmul.f32 %v178, %v180
  %v182 = vadd.f32 %v177, %v181
  %v183 = vld [vmem:[%s45] sm:$0x3]
  %s184 = sld [smem:[#allocation3 + $0x1a]]
  %v185 = vstv %s184
  %v186 = vmul.f32 %v183, %v185
  %v187 = vadd.f32 %v182, %v186
  %v188 = vld [vmem:[%s51] sm:$0x3]
  %s189 = sld [smem:[#allocation3 + $0x1e]]
  %v190 = vstv %s189
  %v191 = vmul.f32 %v188, %v190
  %v192 = vadd.f32 %v187, %v191
  %v193 = vld [vmem:[%s57] sm:$0x3]
  %s194 = sld [smem:[#allocation3 + $0x1b]]
  %v195 = vstv %s194
  %v196 = vmul.f32 %v193, %v195
  %v197 = vadd.f32 %v192, %v196
  %v198 = vld [vmem:[%s63] sm:$0x3]
  %s199 = sld [smem:[#allocation3 + $0x1f]]
  %v200 = vstv %s199
  %v201 = vmul.f32 %v198, %v200
  %v202 = vadd.f32 %v197, %v201
  %v203 = vmax.f32 %v202, 0.0
  %s204 = scalar_lea.vmem %s3, 6
  %205 = vst [vmem:[%s204] sm:$0x3] %v203
  // Predicated region
  $region6: #{cnn_forward.1} parent=0 // pred_check
    _
  $region7: #{cnn_forward.1} parent=0 // pred_check_branch
    %207 = sbr.rel (0) target = $region9
  $region8: #{cnn_forward.1} parent=0 // pred_region
    _
  $region9: #{cnn_forward.1} parent=0 // pred_fallthru
    _
  // Predicated region
  $region10: #{cnn_forward.1} parent=0 // pred_check
    _
  $region11: #{cnn_forward.1} parent=0 // pred_check_branch
    %209 = sbr.rel (0) target = $region13
  $region12: #{cnn_forward.1} parent=0 // pred_region
    _
  $region13: #{cnn_forward.1} parent=0 // pred_fallthru
    _

</llo_original>
